<compile_context>
chip_gen: v7x
topology: tpu7x:2x2x1
jax: 0.10.0
libtpu: 0.0.40
codegen_flags: <defaults>
</compile_context>

<pallas_src>
import jax
import jax.numpy as jnp
from jax.experimental import pallas as pl


def linear_kernel(x_ref, wt_ref, b_ref, o_ref):
    # x_ref:  (B, D_in)       activations
    # wt_ref: (D_in, D_out)   weight, already transposed to (in, out) at prep time
    # b_ref:  (1, D_out)      bias row
    # o_ref:  (B, D_out)      output
    y = jnp.dot(x_ref[...], wt_ref[...], preferred_element_type=jnp.float32)
    # (1, D_out) -> (B, D_out) sublane broadcast, fused VPU add before the store.
    o_ref[...] = (y + b_ref[...]).astype(o_ref.dtype)


def _linear_pallas(x, wt, b):
    """y = x @ wt + b with a single gridless VMEM block per operand."""
    B, Din = x.shape
    Din_w, Dout = wt.shape
    assert Din == Din_w, "weight / activation feature-dim mismatch"
    return pl.pallas_call(
        linear_kernel,
        out_shape=jax.ShapeDtypeStruct((B, Dout), jnp.float32),
        # Gridless call: one full-extent VMEM block per operand (legal even though
        # Dout = 80 is not a multiple of 128; the masked store on one tiny tile is
        # negligible and beats padding the weight to 128x128).
        in_specs=[
            pl.BlockSpec((B, Din), lambda: (0, 0)),
            pl.BlockSpec((Din, Dout), lambda: (0, 0)),
            pl.BlockSpec((1, Dout), lambda: (0, 0)),
        ],
        out_specs=pl.BlockSpec((B, Dout), lambda: (0, 0)),
    )(x, wt, b)


def prepare_linear_params(weight, bias):
    """One-time static-parameter prep.

    weight: (out_features, in_features)  PyTorch nn.Linear convention
    bias:   (out_features,)
    Returns (wt, b) with wt = weight.T as (in, out) f32 and b as a (1, out) f32 row,
    so the kernel never transposes or casts the weight per call.
    """
    wt = jnp.asarray(weight, jnp.float32).T
    b = jnp.asarray(bias, jnp.float32).reshape(1, -1)
    return wt, b


def _params_are_identity(weight, bias):
    """Trace-time (host-side) check on the static parameters."""
    w = jnp.asarray(weight)
    b = jnp.asarray(bias)
    if w.ndim != 2 or w.shape[0] != w.shape[1]:
        return False
    eye = jnp.eye(w.shape[0], dtype=w.dtype)
    return bool(jnp.array_equal(w, eye)) and bool(jnp.all(b == 0))


def make_identity_linear(weight, bias, *, allow_short_circuit=False):
    """Build a jitted apply(x) for this (static) Linear layer.

    If allow_short_circuit is True and the parameters are exactly (eye, zeros),
    apply(x) skips the kernel and the weight DMA entirely and just returns x
    (cast to f32), which is mathematically identical.
    """
    short_circuit = allow_short_circuit and _params_are_identity(weight, bias)
    wt, b = prepare_linear_params(weight, bias)

    @jax.jit
    def apply(x):
        x32 = x.astype(jnp.float32)
        if short_circuit:
            # Weight is statically eye, bias statically zero: the matmul is a no-op.
            return x32
        return _linear_pallas(x32, wt, b)

    return apply


if __name__ == "__main__":
    input_size = 80
    batch = 8

    # Deterministic parameter init per IdentityLinear.__init__:
    #   weight = eye(input_size), bias = zeros(input_size)
    weight = jnp.eye(input_size, dtype=jnp.float32)
    bias = jnp.zeros((input_size,), dtype=jnp.float32)

    key = jax.random.PRNGKey(0)
    x = jax.random.normal(key, (batch, input_size), dtype=jnp.float32)

    # General-Linear Pallas path (kernel actually exercised).
    apply_general = make_identity_linear(weight, bias, allow_short_circuit=False)
    y = apply_general(x)
    jax.block_until_ready(y)

    assert y.shape == x.shape, "IdentityLinear output shape mismatch"
    assert jnp.allclose(y, x, atol=1e-5), "IdentityLinear output mismatch"

    # Trace-time short-circuit path must agree exactly.
    apply_shortcut = make_identity_linear(weight, bias, allow_short_circuit=True)
    y_sc = apply_shortcut(x)
    jax.block_until_ready(y_sc)
    assert jnp.allclose(y_sc, y, atol=1e-6), "short-circuit path mismatch"

    print("KERNEL_OK")
</pallas_src>

<mosaic_0001>
module attributes {stable_mosaic.version = 11 : i64} {
  func.func @linear_kernel(%arg0: memref<8x80xf32, #tpu.memory_space<vmem>>, %arg1: memref<80x80xf32, #tpu.memory_space<vmem>>, %arg2: memref<1x80xf32, #tpu.memory_space<vmem>>, %arg3: memref<8x80xf32, #tpu.memory_space<vmem>>) attributes {dimension_semantics = [], scalar_prefetch = 0 : i64, scratch_operands = 0 : i64, tpu.core_type = #tpu.core_type<tc>} {
    %c0 = arith.constant 0 : index
    %c0_0 = arith.constant 0 : index
    %0 = vector.load %arg0[%c0, %c0_0] : memref<8x80xf32, #tpu.memory_space<vmem>>, vector<8x80xf32>
    %c0_1 = arith.constant 0 : index
    %c0_2 = arith.constant 0 : index
    %1 = vector.load %arg1[%c0_1, %c0_2] : memref<80x80xf32, #tpu.memory_space<vmem>>, vector<80x80xf32>
    %cst = arith.constant dense<0.000000e+00> : vector<8x80xf32>
    %2 = tpu.matmul %0, %1, %cst {dimension_numbers = #tpu.dot_dimension_numbers<[1], [0], [0], [1], [0, 0, 1, 1], [], []>} : vector<8x80xf32>, vector<80x80xf32>, vector<8x80xf32> -> vector<8x80xf32>
    %c0_3 = arith.constant 0 : index
    %c0_4 = arith.constant 0 : index
    %3 = vector.load %arg2[%c0_3, %c0_4] : memref<1x80xf32, #tpu.memory_space<vmem>>, vector<1x80xf32>
    %4 = vector.broadcast %3 : vector<1x80xf32> to vector<8x80xf32>
    %5 = arith.addf %2, %4 : vector<8x80xf32>
    %c0_5 = arith.constant 0 : index
    %c0_6 = arith.constant 0 : index
    %6 = vector.load %arg3[%c0_5, %c0_6] : memref<8x80xf32, #tpu.memory_space<vmem>>, vector<8x80xf32>
    tpu.vector_store %arg3[%c0_5, %c0_6], %5 {strides = array<i32>} : memref<8x80xf32, #tpu.memory_space<vmem>>, vector<8x80xf32>,
    return
  }
}

</mosaic_0001>

<llo_original>
// kernel: apply.1
$region0: #{apply.1}
  #allocation0 [shape = 'u32[]', space=smem, size = 0x4, offset = 0x4, fixed_abs, tag = 'smem constant byte address 0x4 - core index']
  #allocation1 [shape = 'u32[144,128]{1,0:T(1,128)}', space=vmem, size = 0x12000, scoped, tag = 'internal scratch']
  %s0 = inlined_call_operand.hbm [shape: f32[8,80], index: 0, kind: input, shape index: {}]
  %s1 = inlined_call_operand.hbm [shape: f32[80,80], index: 1, kind: input, shape index: {}]
  %s2 = inlined_call_operand.vmem [shape: f32[1,80], index: 2, kind: input, shape index: {}]
  %s3 = inlined_call_operand.hbm [shape: f32[8,80], index: 3, kind: output, shape index: {}]
  %s4 = sld [smem:[#allocation0]]
  $region30: #{apply.1} parent=0
    _
  %s6 = ssub.s32 1, %s4
  %s7 = scalar_select 0, %s6, %s4
  $region1: #{apply.1} parent=0
    #allocation2 [shape = 'u8[4096]{0}', space=vmem, size = 0x1000, scoped, tag = 'input window, operand 0, single buffered']
    #allocation3 [shape = 's32[1]{0}', space=sflag, size = 0x4, scoped, tag = 'scoped memory for apply.1']
    #allocation4 [shape = 's32[1]{0}', space=sflag, size = 0x4, scoped, tag = 'scoped memory for apply.1']
    #allocation5 [shape = 'u8[40960]{0}', space=vmem, size = 0xa000, scoped, tag = 'input window, operand 1, single buffered']
    #allocation6 [shape = 's32[1]{0}', space=sflag, size = 0x4, scoped, tag = 'scoped memory for apply.1']
    #allocation7 [shape = 'u8[4096]{0}', space=vmem, size = 0x1000, scoped, tag = 'output window, operand 0, single buffered']
    %8 = vsyncpa [#allocation3], 0
    %9 = vsyncpa [#allocation6], 0
    %10 = vsyncpa [#allocation4], 0
    // Predicated region
    $region2: #{apply.1} parent=1 // pred_check
      _
    $region3: #{apply.1} parent=1 // pred_check_branch
      %12 = sbr.rel (0) target = $region5
    $region4: #{apply.1} parent=1 // pred_region
      %s14 = ssub.s32 128, 128
      %15 = vsyncadd [#allocation3], %s14
      %s17 = sshll.u32 [#allocation2], 4
      %s18 = int_to_ptr.vmem [resolvable:$true] %s17
      %20 = dma.hbm_to_vmem [thread:$0]  %s0, 128, %s18, [#allocation3]
    $region5: #{apply.1} parent=1 // pred_fallthru
      _
    // Predicated region
    $region6: #{apply.1} parent=1 // pred_check
      _
    $region7: #{apply.1} parent=1 // pred_check_branch
      %22 = sbr.rel (0) target = $region9
    $region8: #{apply.1} parent=1 // pred_region
      %s24 = ssub.s32 1280, 1280
      %25 = vsyncadd [#allocation6], %s24
      %s26 = sshll.u32 [#allocation5], 4
      %s27 = int_to_ptr.vmem [resolvable:$true] %s26
      %32 = dma.hbm_to_vmem [thread:$0]  %s1, 1280, %s27, [#allocation6], 128, 128, 8
    $region9: #{apply.1} parent=1 // pred_fallthru
      _
    // Predicated region
    $region10: #{apply.1} parent=1 // pred_check
      _
    $region11: #{apply.1} parent=1 // pred_check_branch
      %34 = sbr.rel (0) target = $region13
    $region12: #{apply.1} parent=1 // pred_region
      _
    $region13: #{apply.1} parent=1 // pred_fallthru
      _
    // Predicated region
    $region14: #{apply.1} parent=1 // pred_check
      _
    $region15: #{apply.1} parent=1 // pred_check_branch
      %36 = sbr.rel (0) target = $region17
    $region16: #{apply.1} parent=1 // pred_region
      %37 = dma.done [#allocation3], 128
    $region17: #{apply.1} parent=1 // pred_fallthru
      _
    // Predicated region
    $region18: #{apply.1} parent=1 // pred_check
      _
    $region19: #{apply.1} parent=1 // pred_check_branch
      %39 = sbr.rel (0) target = $region21
    $region20: #{apply.1} parent=1 // pred_region
      %40 = dma.done [#allocation6], 1280
    $region21: #{apply.1} parent=1 // pred_fallthru
      _
    %v41 = vld [vmem:[#allocation2] sm:$0xff]
    %v42 = vld [vmem:[#allocation5] sm:$0xff]
    %v43 = vld [vmem:[#allocation5 + $0x8] sm:$0xff]
    %v44 = vld [vmem:[#allocation5 + $0x10] sm:$0xff]
    %v45 = vld [vmem:[#allocation5 + $0x18] sm:$0xff]
    %v46 = vld [vmem:[#allocation5 + $0x20] sm:$0xff]
    %v47 = vld [vmem:[#allocation5 + $0x28] sm:$0xff]
    %v48 = vld [vmem:[#allocation5 + $0x30] sm:$0xff]
    %v49 = vld [vmem:[#allocation5 + $0x38] sm:$0xff]
    %v50 = vld [vmem:[#allocation5 + $0x40] sm:$0xff]
    %v51 = vld [vmem:[#allocation5 + $0x48] sm:$0xff]
    %v52 = vld [vmem:[%s2] sm:$0x1]
    %v54 = vlaneseq
    %v55 = vshrl.u32 %v54, 7
    %v56 = vsub.s32 0, %v55
    %v57 = vrot.slane %v52, %v56
    %vm59 = vcmask 654336
    %v61 = vsel %vm59, %v41, 0
    %63 = vmatprep.subr.mxu0 0.0
    %64 = vmatpush1.msra.mxu0 %v42
    %65 = vmatprep.subr.mxu0 0.0
    %66 = vmatpush1.msra.mxu0 %v43
    %67 = vmatprep.subr.mxu0 0.0
    %68 = vmatpush1.msra.mxu0 %v44
    %69 = vmatprep.subr.mxu0 0.0
    %70 = vmatpush1.msra.mxu0 %v45
    %71 = vmatprep.subr.mxu0 0.0
    %72 = vmatpush1.msra.mxu0 %v46
    %73 = vmatprep.subr.mxu0 0.0
    %74 = vmatpush1.msra.mxu0 %v47
    %75 = vmatprep.subr.mxu0 0.0
    %76 = vmatpush1.msra.mxu0 %v48
    %77 = vmatprep.subr.mxu0 0.0
    %78 = vmatpush1.msra.mxu0 %v49
    %79 = vmatprep.subr.mxu0 0.0
    %80 = vmatpush1.msra.mxu0 %v50
    %81 = vmatprep.subr.mxu0 0.0
    %82 = vmatpush1.msra.mxu0 %v51
    %83 = vmatprep.subr.mxu0 0.0
    %84 = vmatpush1.msra.mxu0 0.0
    %85 = vmatprep.subr.mxu0 0.0
    %86 = vmatpush1.msra.mxu0 0.0
    %87 = vmatprep.subr.mxu0 0.0
    %88 = vmatpush1.msra.mxu0 0.0
    %89 = vmatprep.subr.mxu0 0.0
    %90 = vmatpush1.msra.mxu0 0.0
    %91 = vmatprep.subr.mxu0 0.0
    %92 = vmatpush1.msra.mxu0 0.0
    %93 = vmatprep.subr.mxu0 0.0
    %94 = vmatpush1.msra.mxu0 0.0
    %95 = vmatprep.subr.mxu0 0.0
    %96 = vmatpush1.msra.mxu0 0.0
    %97 = vmatprep.subr.mxu0 0.0
    %98 = vmatpush1.msra.mxu0 0.0
    %99 = vmatprep.subr.mxu0 0.0
    %100 = vmatpush1.msra.mxu0 0.0
    %101 = vmatprep.subr.mxu0 0.0
    %102 = vmatpush1.msra.mxu0 0.0
    %103 = vmatprep.subr.mxu0 0.0
    %104 = vmatpush1.msra.mxu0 0.0
    %105 = vmatprep.subr.mxu0 0.0
    %106 = vmatpush1.msra.mxu0 0.0
    %107 = vmatprep.subr.mxu0 0.0
    %108 = vmatpush1.msra.mxu0 0.0
    %109 = vmatprep.subr.mxu0 0.0
    %110 = vmatpush1.msra.mxu0 0.0
    %111 = vmatprep.subr.mxu0 0.0
    %112 = vmatpush1.msra.mxu0 0.0
    %113 = vmatprep.subr.mxu0 0.0
    %114 = vmatpush1.msra.mxu0 0.0
    %115 = vmatprep.subr.mxu0 0.0
    %116 = vmatpush1.msra.mxu0 0.0
    %117 = vmatprep.subr.mxu0 0.0
    %118 = vmatpush1.msra.mxu0 0.0
    %119 = vmatprep.subr.mxu0 0.0
    %120 = vmatpush1.msra.mxu0 0.0
    %121 = vmatprep.subr.mxu0 0.0
    %122 = vmatpush1.msra.mxu0 0.0
    %123 = vmatprep.subr.mxu0 0.0
    %124 = vmatpush1.msra.mxu0 0.0
    %125 = vmatprep.subr.mxu0 0.0
    %126 = vmatpush1.msra.mxu0 0.0
    %127 = vmatprep.mubr.f32.mxu0 0.0
    %128 = vmatmul.mubr.f32.gmra.mrb[0].mxu0 %v61
    %v129 = vpop.f32.mrb[0].mxu0
    %v130 = vadd.f32 %v57, %v129
    %v131 = vpop.f32.mrb[0].mxu0
    %132 = vdwg.mxu0
    %133 = vst.msk [vmem:[#allocation7] sm:$0xff] %vm59, %v130
    // Predicated region
    $region22: #{apply.1} parent=1 // pred_check
      _
    $region23: #{apply.1} parent=1 // pred_check_branch
      %135 = sbr.rel (0) target = $region25
    $region24: #{apply.1} parent=1 // pred_region
      %s137 = ssub.s32 128, 128
      %138 = vsyncadd [#allocation4], %s137
      %s140 = sshll.u32 [#allocation7], 4
      %s141 = int_to_ptr.vmem [resolvable:$true] %s140
      %143 = dma.vmem_to_hbm [thread:$0]  %s141, 128, %s3, [#allocation4]
    $region25: #{apply.1} parent=1 // pred_fallthru
      _
    // Predicated region
    $region26: #{apply.1} parent=1 // pred_check
      _
    $region27: #{apply.1} parent=1 // pred_check_branch
      %145 = sbr.rel (0) target = $region29
    $region28: #{apply.1} parent=1 // pred_region
      %146 = dma.done [#allocation4], 128
    $region29: #{apply.1} parent=1 // pred_fallthru
      _
    %147 = vsyncpa [#allocation3], 1
    %148 = vsyncpa [#allocation6], 1
    %149 = vsyncpa [#allocation4], 1

</llo_original>
